<compile_context>
chip_gen: v6e
topology: v6e:2x2x1
jax: 0.10.0
libtpu: 0.0.40
codegen_flags: <defaults>
</compile_context>

<pallas_src>
import functools

import jax
import jax.numpy as jnp
from jax import lax
from jax.experimental import pallas as pl
from jax.experimental.pallas import tpu as pltpu


def _reward_criterion_kernel(inp_ref, seq_ref, rew_ref, out_ref, acc_ref,
                             *, tiles_per_core, n_tiles, total_rows, ragged):
    c = pl.program_id(0)          # batch shard ("parallel"; v7x megacore split)
    i = pl.program_id(1)          # batch tile within the shard ("arbitrary")

    @pl.when(i == 0)
    def _init():
        acc_ref[...] = jnp.zeros_like(acc_ref)

    def tile_sums(mask_edge_rows):
        inp = inp_ref[...].astype(jnp.float32)      # (tb, T), cast on the VPU
        rew = rew_ref[...].astype(jnp.float32)
        seq = seq_ref[...]                          # (tb, T) integer
        tb, t = inp.shape

        # mask[:, 0] = 1, mask[:, j] = (seq[:, j-1] > 0) for j >= 1.  The roll
        # wrap-around into column 0 is overridden by the col == 0 branch; this
        # is exact because every block spans the full time axis.
        col = lax.broadcasted_iota(jnp.int32, (tb, t), 1)
        prev = pltpu.roll(seq, shift=1, axis=1)
        mask = jnp.where(col == 0, jnp.float32(1.0),
                         (prev > 0).astype(jnp.float32))
        prod = inp * rew * mask                     # negation folded into wrapper

        if mask_edge_rows:
            # Ragged last tile: rows past the true batch size hold padding
            # garbage (possibly NaN/Inf) -> zero them out of both sums.
            row = lax.broadcasted_iota(jnp.int32, (tb, t), 0)
            tile_id = c * tiles_per_core + i
            valid = (tile_id * tb + row) < total_rows
            mask = jnp.where(valid, mask, jnp.float32(0.0))
            prod = jnp.where(valid, prod, jnp.float32(0.0))

        return jnp.sum(prod), jnp.sum(mask)        # XLU reduce, MXU/VPU idle

    lane = lax.broadcasted_iota(jnp.int32, (8, 128), 1)

    def accumulate(num, den):
        # num lands in lane 0, den in lane 1 of the tiny accumulator tile;
        # one 4 KiB read-modify-write per grid step (was 2x tb*T*4 B).
        acc_ref[...] += jnp.where(lane == 0, num,
                                  jnp.where(lane == 1, den, jnp.float32(0.0)))

    if ragged:
        tile_id = c * tiles_per_core + i
        is_edge = tile_id == n_tiles - 1

        @pl.when(tile_id < n_tiles - 1)
        def _fast():                               # steady state: no row masking
            num, den = tile_sums(False)
            accumulate(num, den)

        @pl.when(is_edge)
        def _edge():                               # ragged last tile only
            num, den = tile_sums(True)
            accumulate(num, den)
    else:
        num, den = tile_sums(False)
        accumulate(num, den)

    @pl.when(i == pl.num_programs(1) - 1)
    def _finalize():
        # Lane-dense, unmasked (8, 128) store of the shard's partial sums.
        out_ref[...] = acc_ref[...]


def _vmem_limit_bytes():
    """Scoped VMEM limit: ~3/4 of physical -> ~96 MiB on v5e/v6e, ~48 MiB on v7x."""
    cap = 64 * 1024 * 1024
    try:
        cap = int(pltpu.get_tpu_info().vmem_capacity_bytes)
    except Exception:
        pass
    return min((cap * 3) // 4, 100 * 1024 * 1024)


def _pick_tile_rows(n_rows, t, in_bytes_per_elem, budget_bytes):
    """Largest batch tile (multiple of 32) whose double-buffered inputs fit."""
    per_row = 2 * t * in_bytes_per_elem            # 2x: BlockSpec double-buffer
    tb = budget_bytes // max(per_row, 1)
    tb = max((tb // 32) * 32, 32)
    if tb >= n_rows:
        return n_rows                              # whole batch in one block
    return int(tb)


def reward_criterion(inp, seq, reward, *, tile_rows=None):
    """inp, reward: (B, T) float (f32 or bf16); seq: (B, T) integer. Returns f32 scalar."""
    b, t = inp.shape
    assert seq.shape == (b, t) and reward.shape == (b, t)

    in_bytes = (jnp.dtype(inp.dtype).itemsize
                + jnp.dtype(reward.dtype).itemsize
                + jnp.dtype(seq.dtype).itemsize)

    vmem_limit = _vmem_limit_bytes()

    if tile_rows is not None:
        # Round the override to a multiple of 32 so int8/bf16 packing is legal.
        tb = max((int(tile_rows) // 32) * 32, 32)
        if tb >= b:
            tb = b
        nt = pl.cdiv(b, tb)
    else:
        budget = max(vmem_limit - 4 * 1024 * 1024, 4 * 1024 * 1024)
        tb = _pick_tile_rows(b, t, in_bytes, budget)
        nt = pl.cdiv(b, tb)
        if nt > 1 and nt % 2 == 1:
            # Prefer an even tile count so the 2-TensorCore split (v7x) has no
            # clamped duplicate tile and no wasted HBM traffic.
            tb_alt = max((((b + nt) // (nt + 1) + 31) // 32) * 32, 32)
            if tb_alt < b:
                nt_alt = pl.cdiv(b, tb_alt)
                if nt_alt % 2 == 0:
                    tb, nt = tb_alt, nt_alt

    nc = 2 if (nt >= 2 and nt % 2 == 0) else 1     # shard tiles across 2 TCs (v7x)
    nb = nt // nc                                  # exact: nt % nc == 0 by construction
    ragged = (b % tb) != 0

    kernel = functools.partial(_reward_criterion_kernel,
                               tiles_per_core=nb, n_tiles=nt,
                               total_rows=b, ragged=ragged)

    def in_map(c, i):
        return (c * nb + i, 0)                     # no clamp: never out of range

    grid_spec = pltpu.PrefetchScalarGridSpec(
        num_scalar_prefetch=0,
        grid=(nc, nb),
        in_specs=[pl.BlockSpec((tb, t), in_map),   # input (log-probs)
                  pl.BlockSpec((tb, t), in_map),   # seq (token ids)
                  pl.BlockSpec((tb, t), in_map)],  # reward
        out_specs=pl.BlockSpec((8, 128), lambda c, i: (c, 0)),
        scratch_shapes=[pltpu.VMEM((8, 128), jnp.float32)],   # (num, den) partials
    )

    cost = pl.CostEstimate(
        flops=5 * b * t,
        transcendentals=0,
        bytes_accessed=b * t * in_bytes + nc * 8 * 128 * 4,
    )

    partials = pl.pallas_call(
        kernel,
        out_shape=jax.ShapeDtypeStruct((nc * 8, 128), jnp.float32),
        grid_spec=grid_spec,
        compiler_params=pltpu.CompilerParams(
            dimension_semantics=("parallel", "arbitrary"),
            vmem_limit_bytes=vmem_limit,
        ),
        cost_estimate=cost,
    )(inp, seq, reward)

    partials = partials.reshape(nc, 8, 128)
    num = jnp.sum(partials[:, 0, 0])
    den = jnp.sum(partials[:, 0, 1])
    return -num / den                              # negation folded out of the kernel


def _reference(inp, seq, reward):
    mask = (seq > 0).astype(jnp.float32)
    mask = jnp.concatenate(
        [jnp.ones((mask.shape[0], 1), jnp.float32), mask[:, :-1]], axis=1)
    out = -inp.astype(jnp.float32) * reward.astype(jnp.float32) * mask
    return jnp.sum(out) / jnp.sum(mask)


if __name__ == "__main__":
    # --- check 1: small f32/int32 case, single full-array block -------------
    B, T = 8, 16
    k1, k2, k3 = jax.random.split(jax.random.PRNGKey(0), 3)
    inp = -jnp.abs(jax.random.normal(k1, (B, T), jnp.float32))      # log-prob-like
    reward = jax.random.normal(k2, (B, T), jnp.float32)
    seq = jax.random.randint(k3, (B, T), minval=0, maxval=5, dtype=jnp.int32)

    out = reward_criterion(inp, seq, reward)
    jax.block_until_ready(out)
    ref = _reference(inp, seq, reward)
    assert jnp.allclose(out, ref, rtol=1e-5, atol=1e-6), (out, ref)

    # --- check 2: ragged batch, narrow dtypes, edge-tile masked path --------
    B2, T2 = 80, 128
    k4, k5, k6 = jax.random.split(jax.random.PRNGKey(1), 3)
    inp2 = -jnp.abs(jax.random.normal(k4, (B2, T2), jnp.float32)).astype(jnp.bfloat16)
    rew2 = jax.random.normal(k5, (B2, T2), jnp.float32).astype(jnp.bfloat16)
    seq2 = jax.random.randint(k6, (B2, T2), minval=0, maxval=5,
                              dtype=jnp.int32).astype(jnp.int8)

    out2 = reward_criterion(inp2, seq2, rew2, tile_rows=32)  # 3 tiles, ragged tail
    jax.block_until_ready(out2)
    ref2 = _reference(inp2, seq2, rew2)
    assert jnp.allclose(out2, ref2, rtol=1e-4, atol=1e-5), (out2, ref2)

    # --- check 3: even tile count -> 2-shard "parallel" fast path only ------
    B3, T3 = 64, 128
    k7, k8, k9 = jax.random.split(jax.random.PRNGKey(2), 3)
    inp3 = -jnp.abs(jax.random.normal(k7, (B3, T3), jnp.float32))
    rew3 = jax.random.normal(k8, (B3, T3), jnp.float32)
    seq3 = jax.random.randint(k9, (B3, T3), minval=0, maxval=5, dtype=jnp.int32)

    out3 = reward_criterion(inp3, seq3, rew3, tile_rows=32)  # 2 tiles, 2 shards
    jax.block_until_ready(out3)
    ref3 = _reference(inp3, seq3, rew3)
    assert jnp.allclose(out3, ref3, rtol=1e-5, atol=1e-6), (out3, ref3)

    print("KERNEL_OK")
</pallas_src>

<mosaic_0001>
module attributes {stable_mosaic.version = 11 : i64} {
  func.func @_reward_criterion_kernel(%arg0: i32, %arg1: i32, %arg2: memref<8x16xf32, #tpu.memory_space<vmem>>, %arg3: memref<8x16xi32, #tpu.memory_space<vmem>>, %arg4: memref<8x16xf32, #tpu.memory_space<vmem>>, %arg5: memref<8x128xf32, #tpu.memory_space<vmem>>, %arg6: memref<8x128xf32, #tpu.memory_space<vmem>>) attributes {dimension_semantics = [#tpu.dimension_semantics<parallel>, #tpu.dimension_semantics<arbitrary>], iteration_bounds = array<i64: 1, 1>, scalar_prefetch = 0 : i64, scratch_operands = 1 : i64, tpu.core_type = #tpu.core_type<tc>, window_params = [{transform_indices = @transform_0, window_bounds = array<i64: 8, 16>}, {transform_indices = @transform_1, window_bounds = array<i64: 8, 16>}, {transform_indices = @transform_2, window_bounds = array<i64: 8, 16>}, {transform_indices = @transform_3, window_bounds = array<i64: 8, 128>}]} {
    %c0_i32 = arith.constant 0 : i32
    %0 = arith.cmpi eq, %arg1, %c0_i32 : i32
    %1 = arith.extui %0 : i1 to i32
    %c0_i32_0 = arith.constant 0 : i32
    %2 = arith.cmpi ne, %1, %c0_i32_0 : i32
    scf.if %2 {
      %cst_19 = arith.constant 0.000000e+00 : f32
      %42 = vector.broadcast %cst_19 : f32 to vector<8x128xf32>
      %c0_20 = arith.constant 0 : index
      %c0_21 = arith.constant 0 : index
      %43 = vector.load %arg6[%c0_20, %c0_21] : memref<8x128xf32, #tpu.memory_space<vmem>>, vector<8x128xf32>
      tpu.vector_store %arg6[%c0_20, %c0_21], %42 {strides = array<i32>} : memref<8x128xf32, #tpu.memory_space<vmem>>, vector<8x128xf32>,
    } else {
    }
    %3 = tpu.iota {dimensions = array<i32: 1>} : vector<8x128xi32>
    %c0 = arith.constant 0 : index
    %c0_1 = arith.constant 0 : index
    %4 = vector.load %arg2[%c0, %c0_1] : memref<8x16xf32, #tpu.memory_space<vmem>>, vector<8x16xf32>
    %c0_2 = arith.constant 0 : index
    %c0_3 = arith.constant 0 : index
    %5 = vector.load %arg4[%c0_2, %c0_3] : memref<8x16xf32, #tpu.memory_space<vmem>>, vector<8x16xf32>
    %c0_4 = arith.constant 0 : index
    %c0_5 = arith.constant 0 : index
    %6 = vector.load %arg3[%c0_4, %c0_5] : memref<8x16xi32, #tpu.memory_space<vmem>>, vector<8x16xi32>
    %7 = tpu.iota {dimensions = array<i32: 1>} : vector<8x16xi32>
    %c1_i32 = arith.constant 1 : i32
    %8 = tpu.dynamic_rotate %6 by %c1_i32 dim 1 : vector<8x16xi32>, i32 -> vector<8x16xi32>
    %c0_i32_6 = arith.constant 0 : i32
    %9 = vector.broadcast %c0_i32_6 : i32 to vector<8x16xi32>
    %10 = arith.cmpi eq, %7, %9 : vector<8x16xi32>
    %c0_i32_7 = arith.constant 0 : i32
    %11 = vector.broadcast %c0_i32_7 : i32 to vector<8x16xi32>
    %12 = arith.cmpi sgt, %8, %11 : vector<8x16xi32>
    %13 = arith.extui %12 : vector<8x16xi1> to vector<8x16xi32>
    %14 = arith.sitofp %13 : vector<8x16xi32> to vector<8x16xf32>
    %cst = arith.constant 1.000000e+00 : f32
    %15 = vector.broadcast %cst : f32 to vector<8x16xf32>
    %16 = arith.select %10, %15, %14 : vector<8x16xi1>, vector<8x16xf32>
    %17 = arith.mulf %4, %5 : vector<8x16xf32>
    %18 = arith.mulf %17, %16 : vector<8x16xf32>
    %19 = vector.shape_cast %18 : vector<8x16xf32> to vector<1x8x16xf32>
    %cst_8 = arith.constant dense<0.000000e+00> : vector<1xf32>
    %20 = vector.multi_reduction <add>, %19, %cst_8 [1, 2] : vector<1x8x16xf32> to vector<1xf32>
    %21 = vector.shape_cast %20 : vector<1xf32> to vector<1x1x1xf32>
    %22 = vector.extract %21[0, 0, 0] : f32 from vector<1x1x1xf32>
    %23 = vector.shape_cast %16 : vector<8x16xf32> to vector<1x8x16xf32>
    %cst_9 = arith.constant dense<0.000000e+00> : vector<1xf32>
    %24 = vector.multi_reduction <add>, %23, %cst_9 [1, 2] : vector<1x8x16xf32> to vector<1xf32>
    %25 = vector.shape_cast %24 : vector<1xf32> to vector<1x1x1xf32>
    %26 = vector.extract %25[0, 0, 0] : f32 from vector<1x1x1xf32>
    %c0_10 = arith.constant 0 : index
    %c0_11 = arith.constant 0 : index
    %27 = vector.load %arg6[%c0_10, %c0_11] : memref<8x128xf32, #tpu.memory_space<vmem>>, vector<8x128xf32>
    %c0_i32_12 = arith.constant 0 : i32
    %28 = vector.broadcast %c0_i32_12 : i32 to vector<8x128xi32>
    %29 = arith.cmpi eq, %3, %28 : vector<8x128xi32>
    %c1_i32_13 = arith.constant 1 : i32
    %30 = vector.broadcast %c1_i32_13 : i32 to vector<8x128xi32>
    %31 = arith.cmpi eq, %3, %30 : vector<8x128xi32>
    %cst_14 = arith.constant 0.000000e+00 : f32
    %32 = vector.broadcast %26 : f32 to vector<8x128xf32>
    %33 = vector.broadcast %cst_14 : f32 to vector<8x128xf32>
    %34 = arith.select %31, %32, %33 : vector<8x128xi1>, vector<8x128xf32>
    %35 = vector.broadcast %22 : f32 to vector<8x128xf32>
    %36 = arith.select %29, %35, %34 : vector<8x128xi1>, vector<8x128xf32>
    %37 = arith.addf %27, %36 : vector<8x128xf32>
    %c0_15 = arith.constant 0 : index
    %c0_16 = arith.constant 0 : index
    %38 = vector.load %arg6[%c0_15, %c0_16] : memref<8x128xf32, #tpu.memory_space<vmem>>, vector<8x128xf32>
    tpu.vector_store %arg6[%c0_15, %c0_16], %37 {strides = array<i32>} : memref<8x128xf32, #tpu.memory_space<vmem>>, vector<8x128xf32>,
    %c0_i32_17 = arith.constant 0 : i32
    %39 = arith.cmpi eq, %arg1, %c0_i32_17 : i32
    %40 = arith.extui %39 : i1 to i32
    %c0_i32_18 = arith.constant 0 : i32
    %41 = arith.cmpi ne, %40, %c0_i32_18 : i32
    scf.if %41 {
      %c0_19 = arith.constant 0 : index
      %c0_20 = arith.constant 0 : index
      %42 = vector.load %arg6[%c0_19, %c0_20] : memref<8x128xf32, #tpu.memory_space<vmem>>, vector<8x128xf32>
      %c0_21 = arith.constant 0 : index
      %c0_22 = arith.constant 0 : index
      %43 = vector.load %arg5[%c0_21, %c0_22] : memref<8x128xf32, #tpu.memory_space<vmem>>, vector<8x128xf32>
      tpu.vector_store %arg5[%c0_21, %c0_22], %42 {strides = array<i32>} : memref<8x128xf32, #tpu.memory_space<vmem>>, vector<8x128xf32>,
    } else {
    }
    return
  }
  func.func @transform_0(%arg0: i32, %arg1: i32) -> (i32, i32) {
    %c1_i32 = arith.constant 1 : i32
    %0 = arith.muli %arg0, %c1_i32 : i32
    %1 = arith.addi %0, %arg1 : i32
    %c0_i32 = arith.constant 0 : i32
    %c0_i32_0 = arith.constant 0 : i32
    return %1, %c0_i32 : i32, i32
  }
  func.func @transform_1(%arg0: i32, %arg1: i32) -> (i32, i32) {
    %c1_i32 = arith.constant 1 : i32
    %0 = arith.muli %arg0, %c1_i32 : i32
    %1 = arith.addi %0, %arg1 : i32
    %c0_i32 = arith.constant 0 : i32
    %c0_i32_0 = arith.constant 0 : i32
    return %1, %c0_i32 : i32, i32
  }
  func.func @transform_2(%arg0: i32, %arg1: i32) -> (i32, i32) {
    %c1_i32 = arith.constant 1 : i32
    %0 = arith.muli %arg0, %c1_i32 : i32
    %1 = arith.addi %0, %arg1 : i32
    %c0_i32 = arith.constant 0 : i32
    %c0_i32_0 = arith.constant 0 : i32
    return %1, %c0_i32 : i32, i32
  }
  func.func @transform_3(%arg0: i32, %arg1: i32) -> (i32, i32) {
    %c0_i32 = arith.constant 0 : i32
    %c0_i32_0 = arith.constant 0 : i32
    return %arg0, %c0_i32 : i32, i32
  }
}

</mosaic_0001>

<llo_original>
// kernel: tpu_custom_call.1
$region0: #{tpu_custom_call.1}
  #allocation0 [shape = 'u32[]', space=smem, size = 0x4, offset = 0x4, fixed_abs, tag = 'smem constant byte address 0x4 - core index']
  #allocation1 [shape = 'u32[144,128]{1,0:T(1,128)}', space=vmem, size = 0x12000, scoped, tag = 'internal scratch']
  #allocation2 [shape = 'f32[8,128]{1,0:T(8,128)}', space=vmem, size = 0x1000, scoped, tag = 'scratch operand']
  %s0 = inlined_call_operand.hbm [shape: f32[8,16], index: 0, kind: input, shape index: {}]
  %s1 = inlined_call_operand.hbm [shape: s32[8,16], index: 1, kind: input, shape index: {}]
  %s2 = inlined_call_operand.hbm [shape: f32[8,16], index: 2, kind: input, shape index: {}]
  %s3 = inlined_call_operand.hbm [shape: f32[8,128], index: 3, kind: output, shape index: {}]
  %s4 = sld [smem:[#allocation0]]
  $region42: #{tpu_custom_call.1} parent=0
    _
  %s6 = ssub.s32 1, %s4
  %s7 = scalar_select 0, %s6, %s4
  $region1: #{tpu_custom_call.1} parent=0
    #allocation3 [shape = 'u8[4096]{0}', space=vmem, size = 0x1000, scoped, tag = 'input window, operand 0, single buffered']
    #allocation4 [shape = 's32[1]{0}', space=sflag, size = 0x4, scoped, tag = 'scoped memory for tpu_custom_call.1']
    #allocation5 [shape = 's32[1]{0}', space=sflag, size = 0x4, scoped, tag = 'scoped memory for tpu_custom_call.1']
    #allocation6 [shape = 'u8[4096]{0}', space=vmem, size = 0x1000, scoped, tag = 'input window, operand 1, single buffered']
    #allocation7 [shape = 's32[1]{0}', space=sflag, size = 0x4, scoped, tag = 'scoped memory for tpu_custom_call.1']
    #allocation8 [shape = 'u8[4096]{0}', space=vmem, size = 0x1000, scoped, tag = 'input window, operand 2, single buffered']
    #allocation9 [shape = 'u8[4096]{0}', space=vmem, size = 0x1000, scoped, tag = 'output window, operand 0, single buffered']
    %8 = vsyncpa [#allocation4], 0
    %9 = vsyncpa [#allocation7], 0
    %10 = vsyncpa [#allocation5], 0
    // Predicated region
    $region2: #{tpu_custom_call.1} parent=1 // pred_check
      _
    $region3: #{tpu_custom_call.1} parent=1 // pred_check_branch
      %12 = sbr.rel (0) target = $region5
    $region4: #{tpu_custom_call.1} parent=1 // pred_region
      %s13 = sadd.s32 0, 0
      %s15 = ssub.s32 128, 128
      %16 = vsyncadd [#allocation4], %s15
      %s17 = smul.addr %s13, 128
      %s18 = scalar_lea.hbm %s0, %s17
      %s20 = sshll.u32 [#allocation3], 4
      %s21 = int_to_ptr.vmem [resolvable:$true] %s20
      %23 = dma.hbm_to_vmem [thread:$0]  %s18, 128, %s21, [#allocation4]
    $region5: #{tpu_custom_call.1} parent=1 // pred_fallthru
      _
    // Predicated region
    $region6: #{tpu_custom_call.1} parent=1 // pred_check
      _
    $region7: #{tpu_custom_call.1} parent=1 // pred_check_branch
      %25 = sbr.rel (0) target = $region9
    $region8: #{tpu_custom_call.1} parent=1 // pred_region
      %s26 = sadd.s32 0, 0
      %s28 = ssub.s32 128, 128
      %29 = vsyncadd [#allocation7], %s28
      %s30 = smul.addr %s26, 128
      %s31 = scalar_lea.hbm %s1, %s30
      %s33 = sshll.u32 [#allocation6], 4
      %s34 = int_to_ptr.vmem [resolvable:$true] %s33
      %36 = dma.hbm_to_vmem [thread:$0]  %s31, 128, %s34, [#allocation7]
    $region9: #{tpu_custom_call.1} parent=1 // pred_fallthru
      _
    // Predicated region
    $region10: #{tpu_custom_call.1} parent=1 // pred_check
      _
    $region11: #{tpu_custom_call.1} parent=1 // pred_check_branch
      %38 = sbr.rel (0) target = $region13
    $region12: #{tpu_custom_call.1} parent=1 // pred_region
      %s39 = sadd.s32 0, 0
      %s41 = ssub.s32 128, 128
      %42 = vsyncadd [#allocation7], %s41
      %s43 = smul.addr %s39, 128
      %s44 = scalar_lea.hbm %s2, %s43
      %s46 = sshll.u32 [#allocation8], 4
      %s47 = int_to_ptr.vmem [resolvable:$true] %s46
      %49 = dma.hbm_to_vmem [thread:$0]  %s44, 128, %s47, [#allocation7]
    $region13: #{tpu_custom_call.1} parent=1 // pred_fallthru
      _
    // Predicated region
    $region14: #{tpu_custom_call.1} parent=1 // pred_check
      _
    $region15: #{tpu_custom_call.1} parent=1 // pred_check_branch
      %51 = sbr.rel (0) target = $region17
    $region16: #{tpu_custom_call.1} parent=1 // pred_region
      %52 = dma.done [#allocation4], 128
    $region17: #{tpu_custom_call.1} parent=1 // pred_fallthru
      _
    // Predicated region
    $region18: #{tpu_custom_call.1} parent=1 // pred_check
      _
    $region19: #{tpu_custom_call.1} parent=1 // pred_check_branch
      %54 = sbr.rel (0) target = $region21
    $region20: #{tpu_custom_call.1} parent=1 // pred_region
      %55 = dma.done [#allocation7], 128
    $region21: #{tpu_custom_call.1} parent=1 // pred_fallthru
      _
    // Predicated region
    $region22: #{tpu_custom_call.1} parent=1 // pred_check
      _
    $region23: #{tpu_custom_call.1} parent=1 // pred_check_branch
      %57 = sbr.rel (0) target = $region25
    $region24: #{tpu_custom_call.1} parent=1 // pred_region
      %58 = dma.done [#allocation7], 128
    $region25: #{tpu_custom_call.1} parent=1 // pred_fallthru
      _
    %s59 = sadd.s32 0, 0
    %s60 = sadd.s32 0, 0
    %s61 = sadd.s32 0, 0
    %p62 = scmp.eq.s32.totalorder 0, 0
    // Predicated region
    $region26: #{tpu_custom_call.1} parent=1 // pred_check
      %p63 = pneg %p62
    $region27: #{tpu_custom_call.1} parent=1 // pred_check_branch
      %65 = sbr.rel (%p63) target = $region29
    $region28: #{tpu_custom_call.1} parent=1 // pred_region
      %66 = vst [vmem:[#allocation2] sm:$0xff] 0.0
    $region29: #{tpu_custom_call.1} parent=1 // pred_fallthru
      _
    %v67 = vlaneseq
    %v68 = vand.u32 %v67, 127
    %v69 = vld [vmem:[#allocation3] sm:$0xff]
    %v70 = vld [vmem:[#allocation8] sm:$0xff]
    %v71 = vld [vmem:[#allocation6] sm:$0xff]
    %vm72 = vcmask 1047680
    %73 = vrot.lane.b32.xlu0 %v71, 16
    %v74 = vpop.permute.xlu0 %73
    %v75 = vsel %vm72, %v74, %v71
    %76 = vrot.lane.b32.xlu0 %v75, 16
    %v77 = vpop.permute.xlu0 %76
    %v78 = vsel %vm72, %v77, %v71
    %vm79 = vcmp.eq.s32.totalorder %v68, 0
    %vm80 = vcmp.gt.s32.totalorder %v78, 0
    %v81 = vsel %vm80, 1, 0
    %v82 = vcvt.s32.f32 %v81
    %84 = vrot.lane.b32.xlu0 %v82, 113
    %v85 = vpop.permute.xlu0 %84
    %v87 = vsel %vm79, 1.0, %v85
    %v88 = vmul.f32 %v69, %v70
    %v89 = vmul.f32 %v88, %v87
    %vm90 = vcmask 130048
    %v91 = vsel %vm90, %v89, 0.0
    %92 = vadd.xlane.f32.xlu0 %v91
    %v93 = vpop.xlane.xlu0 %92
    %v94 = vrot.slane %v93, 4
    %v95 = vadd.f32 %v93, %v94
    %v96 = vrot.slane %v95, 2
    %v97 = vadd.f32 %v95, %v96
    %v98 = vrot.slane %v97, 1
    %v99 = vadd.f32 %v97, %v98
    %s100 = vtos %v99
    %v101 = vsel %vm90, %v87, 0.0
    %102 = vadd.xlane.f32.xlu0 %v101
    %v103 = vpop.xlane.xlu0 %102
    %v104 = vrot.slane %v103, 4
    %v105 = vadd.f32 %v103, %v104
    %v106 = vrot.slane %v105, 2
    %v107 = vadd.f32 %v105, %v106
    %v108 = vrot.slane %v107, 1
    %v109 = vadd.f32 %v107, %v108
    %s110 = vtos %v109
    %v111 = vld [vmem:[#allocation2] sm:$0xff]
    %vm112 = vcmp.eq.s32.totalorder %v68, 1
    %v113 = vstv %s110
    %v114 = vsel %vm112, %v113, 0.0
    %v115 = vstv %s100
    %v116 = vsel %vm79, %v115, %v114
    %v117 = vadd.f32 %v111, %v116
    %118 = vst [vmem:[#allocation2] sm:$0xff] %v117
    // Predicated region
    $region30: #{tpu_custom_call.1} parent=1 // pred_check
      %p119 = pneg %p62
    $region31: #{tpu_custom_call.1} parent=1 // pred_check_branch
      %121 = sbr.rel (%p119) target = $region33
    $region32: #{tpu_custom_call.1} parent=1 // pred_region
      %v122 = vld [vmem:[#allocation2] sm:$0xff]
      %123 = vst [vmem:[#allocation9] sm:$0xff] %v122
    $region33: #{tpu_custom_call.1} parent=1 // pred_fallthru
      _
    // Predicated region
    $region34: #{tpu_custom_call.1} parent=1 // pred_check
      _
    $region35: #{tpu_custom_call.1} parent=1 // pred_check_branch
      %125 = sbr.rel (0) target = $region37
    $region36: #{tpu_custom_call.1} parent=1 // pred_region
      %s127 = ssub.s32 128, 128
      %128 = vsyncadd [#allocation5], %s127
      %s130 = sshll.u32 [#allocation9], 4
      %s131 = int_to_ptr.vmem [resolvable:$true] %s130
      %133 = dma.vmem_to_hbm [thread:$0]  %s131, 128, %s3, [#allocation5]
    $region37: #{tpu_custom_call.1} parent=1 // pred_fallthru
      _
    // Predicated region
    $region38: #{tpu_custom_call.1} parent=1 // pred_check
      _
    $region39: #{tpu_custom_call.1} parent=1 // pred_check_branch
      %135 = sbr.rel (0) target = $region41
    $region40: #{tpu_custom_call.1} parent=1 // pred_region
      %136 = dma.done [#allocation5], 128
    $region41: #{tpu_custom_call.1} parent=1 // pred_fallthru
      _
    %137 = vsyncpa [#allocation4], 1
    %138 = vsyncpa [#allocation7], 1
    %139 = vsyncpa [#allocation5], 1

</llo_original>
